<compile_context>
chip_gen: v5e
topology: v5e:2x2
jax: 0.10.0
libtpu: 0.0.40
codegen_flags: <defaults>
</compile_context>

<pallas_src>
import jax
import jax.numpy as jnp
from jax.experimental import pallas as pl
from jax.experimental.pallas import tpu as pltpu

numclasses_to_nn = {10: [64, 64], 100: [512, 512], 200: [1024, 1024], 256: [1024, 1024]}


def _round_up(x, m):
    return ((x + m - 1) // m) * m


def _cdiv(a, b):
    return -(-a // b)


def _recover_nn_kernel(x_ref, w1_ref, b1_ref, w2_ref, b2_ref, w3_ref, b3_ref, o_ref):
    # One (TB, C) batch tile; weights/biases use a constant block index (resident, DMA'd once).
    w_dtype = w1_ref.dtype
    x = x_ref[...].astype(w_dtype)
    # Layer 1: MXU matmul with f32 accumulation; bias-add + ReLU on the f32 accumulator.
    h = jnp.dot(x, w1_ref[...], preferred_element_type=jnp.float32) + b1_ref[...]
    h = jnp.maximum(h, 0.0).astype(w_dtype)  # cast down only for the next matmul
    # Layer 2
    h = jnp.dot(h, w2_ref[...], preferred_element_type=jnp.float32) + b2_ref[...]
    h = jnp.maximum(h, 0.0).astype(w_dtype)
    # Layer 3 (no activation)
    out = jnp.dot(h, w3_ref[...], preferred_element_type=jnp.float32) + b3_ref[...]
    o_ref[...] = out.astype(o_ref.dtype)


def prepare_params(params, *, param_dtype=jnp.bfloat16):
    """One-time prep: pad hidden/output dims to multiples of 128 and cast weights.

    Zero padding is exact for this MLP: padded hidden units are relu(0 + 0) = 0 and feed
    zero weight rows; padded output columns are sliced off in the wrapper. Biases stay f32
    (added to the f32 accumulator). Call this ONCE and reuse the result across forwards.
    """
    f32 = jnp.float32
    C, H1 = params["w1"].shape
    H2 = params["w2"].shape[1]
    H1p, H2p, Cp = _round_up(H1, 128), _round_up(H2, 128), _round_up(C, 128)

    def pad2(a, shape, dtype):
        r, c = a.shape
        return jnp.zeros(shape, dtype).at[:r, :c].set(a.astype(dtype))

    return {
        "w1": pad2(params["w1"], (C, H1p), param_dtype),        # contraction dim stays unpadded
        "b1": pad2(params["b1"].reshape(1, -1), (1, H1p), f32),
        "w2": pad2(params["w2"], (H1p, H2p), param_dtype),
        "b2": pad2(params["b2"].reshape(1, -1), (1, H2p), f32),
        "w3": pad2(params["w3"], (H2p, Cp), param_dtype),
        "b3": pad2(params["b3"].reshape(1, -1), (1, Cp), f32),
    }


def recover_nn_forward(x, prepared, *, batch_tile=1024, out_dtype=jnp.float32):
    """Forward pass of Recover_NN via a fused, batch-tiled Pallas kernel.

    x:        (B, num_classes) array (any float dtype; cast to the weight dtype in-kernel)
    prepared: output of prepare_params (padded weights/biases)
    returns   (B, num_classes) logits in out_dtype
    """
    B, C = x.shape
    w1, b1 = prepared["w1"], prepared["b1"]
    w2, b2 = prepared["w2"], prepared["b2"]
    w3, b3 = prepared["w3"], prepared["b3"]
    assert w1.shape[0] == C, "x feature dim must match num_classes used in prepare_params"
    H1p, H2p, Cp = w1.shape[1], w2.shape[1], w3.shape[1]

    # Balanced batch tiling: waste < 8 rows per tile; at least 2 tiles (when B > 8) so the
    # "parallel" batch axis can shard across v7x's two TensorCores.
    if B <= 8:
        TB, nb = B, 1
    else:
        nb = _cdiv(B, batch_tile)
        if nb == 1:
            nb = 2
        TB = _round_up(_cdiv(B, nb), 8)
        nb = _cdiv(B, TB)

    def resident(shape):  # constant block index -> weights stay resident across the grid
        return pl.BlockSpec(shape, lambda i: (0, 0))

    flops = 2 * nb * TB * (C * H1p + H1p * H2p + H2p * Cp)
    bytes_accessed = (
        x.size * x.dtype.itemsize
        + sum(a.size * a.dtype.itemsize for a in (w1, b1, w2, b2, w3, b3))
        + B * Cp * jnp.dtype(out_dtype).itemsize
    )

    out_padded = pl.pallas_call(
        _recover_nn_kernel,
        out_shape=jax.ShapeDtypeStruct((B, Cp), out_dtype),
        grid=(nb,),
        in_specs=[
            pl.BlockSpec((TB, C), lambda i: (i, 0)),   # x: unpadded, full last dim
            resident(w1.shape), resident(b1.shape),
            resident(w2.shape), resident(b2.shape),
            resident(w3.shape), resident(b3.shape),
        ],
        out_specs=pl.BlockSpec((TB, Cp), lambda i: (i, 0)),
        compiler_params=pltpu.CompilerParams(
            dimension_semantics=("parallel",),
            vmem_limit_bytes=32 * 1024 * 1024,
        ),
        cost_estimate=pl.CostEstimate(flops=flops, transcendentals=0,
                                      bytes_accessed=bytes_accessed),
    )(x, w1, b1, w2, b2, w3, b3)

    return out_padded[:, :C]


def recover_nn_predict(x, prepared, **kwargs):
    """Equivalent of Recover_NN.predict: softmax over dim=1 (plain-JAX glue)."""
    logits = recover_nn_forward(x, prepared, **kwargs)
    return jax.nn.softmax(logits, axis=1)


def init_params(key, num_classes=10):
    """Deterministic init mirroring torch.nn.Linear default (U[-1/sqrt(fan_in), 1/sqrt(fan_in)])."""
    h1, h2 = numclasses_to_nn[num_classes]
    dims = [(num_classes, h1), (h1, h2), (h2, num_classes)]
    params = {}
    keys = jax.random.split(key, 6)
    for idx, (fan_in, fan_out) in enumerate(dims, start=1):
        bound = 1.0 / (fan_in ** 0.5)
        params[f"w{idx}"] = jax.random.uniform(keys[2 * (idx - 1)], (fan_in, fan_out),
                                               minval=-bound, maxval=bound, dtype=jnp.float32)
        params[f"b{idx}"] = jax.random.uniform(keys[2 * (idx - 1) + 1], (1, fan_out),
                                               minval=-bound, maxval=bound, dtype=jnp.float32)
    return params


if __name__ == "__main__":
    num_classes = 10

    key = jax.random.PRNGKey(0)
    k_params, k_x1, k_x2 = jax.random.split(key, 3)
    params = init_params(k_params, num_classes=num_classes)

    def ref_forward(xx):
        h1 = jnp.maximum(xx @ params["w1"] + params["b1"], 0.0)
        h2 = jnp.maximum(h1 @ params["w2"] + params["b2"], 0.0)
        return h2 @ params["w3"] + params["b3"]

    # One-time param prep (hoisted out of the per-call path).
    prep_f32 = prepare_params(params, param_dtype=jnp.float32)    # validation path
    prep_bf16 = prepare_params(params, param_dtype=jnp.bfloat16)  # perf default

    # Small batch (single tile).
    x = jax.random.uniform(k_x1, (8, num_classes), dtype=jnp.float32)
    ref = ref_forward(x)

    logits_f32 = recover_nn_forward(x, prep_f32)
    jax.block_until_ready(logits_f32)
    assert logits_f32.shape == (8, num_classes)
    assert jnp.allclose(logits_f32, ref, atol=1e-5, rtol=1e-5), "f32 kernel mismatch vs reference"

    logits_bf16 = recover_nn_forward(x, prep_bf16)
    jax.block_until_ready(logits_bf16)
    assert jnp.allclose(logits_bf16, ref, atol=5e-2, rtol=5e-2), "bf16 kernel mismatch vs reference"

    # Uneven batch: exercises the multi-tile grid and the masked partial last tile.
    x2 = jax.random.uniform(k_x2, (50, num_classes), dtype=jnp.float32)
    ref2 = ref_forward(x2)
    logits2 = recover_nn_forward(x2, prep_f32, batch_tile=16)
    jax.block_until_ready(logits2)
    assert logits2.shape == (50, num_classes)
    assert jnp.allclose(logits2, ref2, atol=1e-5, rtol=1e-5), "uneven-batch kernel mismatch"

    # predict() path (softmax glue in plain JAX).
    probs = recover_nn_predict(x, prep_bf16)
    jax.block_until_ready(probs)
    assert jnp.allclose(jnp.sum(probs, axis=1), jnp.ones((8,)), atol=1e-3)

    print("KERNEL_OK")
</pallas_src>

<mosaic_0001>
module attributes {stable_mosaic.version = 11 : i64} {
  func.func @_recover_nn_kernel(%arg0: i32, %arg1: memref<8x10xf32, #tpu.memory_space<vmem>>, %arg2: memref<10x128xf32, #tpu.memory_space<vmem>>, %arg3: memref<1x128xf32, #tpu.memory_space<vmem>>, %arg4: memref<128x128xf32, #tpu.memory_space<vmem>>, %arg5: memref<1x128xf32, #tpu.memory_space<vmem>>, %arg6: memref<128x128xf32, #tpu.memory_space<vmem>>, %arg7: memref<1x128xf32, #tpu.memory_space<vmem>>, %arg8: memref<8x128xf32, #tpu.memory_space<vmem>>) attributes {dimension_semantics = [#tpu.dimension_semantics<parallel>], iteration_bounds = array<i64: 1>, scalar_prefetch = 0 : i64, scratch_operands = 0 : i64, tpu.core_type = #tpu.core_type<tc>, window_params = [{transform_indices = @transform_0, window_bounds = array<i64: 8, 10>}, {pipeline_mode = #tpu.pipeline_mode<synchronous>, transform_indices = @transform_1, window_bounds = array<i64: 10, 128>}, {pipeline_mode = #tpu.pipeline_mode<synchronous>, transform_indices = @transform_2, window_bounds = array<i64: 1, 128>}, {pipeline_mode = #tpu.pipeline_mode<synchronous>, transform_indices = @transform_3, window_bounds = array<i64: 128, 128>}, {pipeline_mode = #tpu.pipeline_mode<synchronous>, transform_indices = @transform_4, window_bounds = array<i64: 1, 128>}, {pipeline_mode = #tpu.pipeline_mode<synchronous>, transform_indices = @transform_5, window_bounds = array<i64: 128, 128>}, {pipeline_mode = #tpu.pipeline_mode<synchronous>, transform_indices = @transform_6, window_bounds = array<i64: 1, 128>}, {transform_indices = @transform_7, window_bounds = array<i64: 8, 128>}]} {
    %c0 = arith.constant 0 : index
    %c0_0 = arith.constant 0 : index
    %0 = vector.load %arg1[%c0, %c0_0] : memref<8x10xf32, #tpu.memory_space<vmem>>, vector<8x10xf32>
    %c0_1 = arith.constant 0 : index
    %c0_2 = arith.constant 0 : index
    %1 = vector.load %arg2[%c0_1, %c0_2] : memref<10x128xf32, #tpu.memory_space<vmem>>, vector<10x128xf32>
    %cst = arith.constant dense<0.000000e+00> : vector<8x128xf32>
    %2 = tpu.matmul %0, %1, %cst {dimension_numbers = #tpu.dot_dimension_numbers<[1], [0], [0], [1], [0, 0, 1, 1], [], []>} : vector<8x10xf32>, vector<10x128xf32>, vector<8x128xf32> -> vector<8x128xf32>
    %c0_3 = arith.constant 0 : index
    %c0_4 = arith.constant 0 : index
    %3 = vector.load %arg3[%c0_3, %c0_4] : memref<1x128xf32, #tpu.memory_space<vmem>>, vector<1x128xf32>
    %4 = vector.broadcast %3 : vector<1x128xf32> to vector<8x128xf32>
    %5 = arith.addf %2, %4 : vector<8x128xf32>
    %cst_5 = arith.constant 0.000000e+00 : f32
    %6 = vector.broadcast %cst_5 : f32 to vector<8x128xf32>
    %7 = arith.maximumf %5, %6 : vector<8x128xf32>
    %c0_6 = arith.constant 0 : index
    %c0_7 = arith.constant 0 : index
    %8 = vector.load %arg4[%c0_6, %c0_7] : memref<128x128xf32, #tpu.memory_space<vmem>>, vector<128x128xf32>
    %cst_8 = arith.constant dense<0.000000e+00> : vector<8x128xf32>
    %9 = tpu.matmul %7, %8, %cst_8 {dimension_numbers = #tpu.dot_dimension_numbers<[1], [0], [0], [1], [0, 0, 1, 1], [], []>} : vector<8x128xf32>, vector<128x128xf32>, vector<8x128xf32> -> vector<8x128xf32>
    %c0_9 = arith.constant 0 : index
    %c0_10 = arith.constant 0 : index
    %10 = vector.load %arg5[%c0_9, %c0_10] : memref<1x128xf32, #tpu.memory_space<vmem>>, vector<1x128xf32>
    %11 = vector.broadcast %10 : vector<1x128xf32> to vector<8x128xf32>
    %12 = arith.addf %9, %11 : vector<8x128xf32>
    %cst_11 = arith.constant 0.000000e+00 : f32
    %13 = vector.broadcast %cst_11 : f32 to vector<8x128xf32>
    %14 = arith.maximumf %12, %13 : vector<8x128xf32>
    %c0_12 = arith.constant 0 : index
    %c0_13 = arith.constant 0 : index
    %15 = vector.load %arg6[%c0_12, %c0_13] : memref<128x128xf32, #tpu.memory_space<vmem>>, vector<128x128xf32>
    %cst_14 = arith.constant dense<0.000000e+00> : vector<8x128xf32>
    %16 = tpu.matmul %14, %15, %cst_14 {dimension_numbers = #tpu.dot_dimension_numbers<[1], [0], [0], [1], [0, 0, 1, 1], [], []>} : vector<8x128xf32>, vector<128x128xf32>, vector<8x128xf32> -> vector<8x128xf32>
    %c0_15 = arith.constant 0 : index
    %c0_16 = arith.constant 0 : index
    %17 = vector.load %arg7[%c0_15, %c0_16] : memref<1x128xf32, #tpu.memory_space<vmem>>, vector<1x128xf32>
    %18 = vector.broadcast %17 : vector<1x128xf32> to vector<8x128xf32>
    %19 = arith.addf %16, %18 : vector<8x128xf32>
    %c0_17 = arith.constant 0 : index
    %c0_18 = arith.constant 0 : index
    %20 = vector.load %arg8[%c0_17, %c0_18] : memref<8x128xf32, #tpu.memory_space<vmem>>, vector<8x128xf32>
    tpu.vector_store %arg8[%c0_17, %c0_18], %19 {strides = array<i32>} : memref<8x128xf32, #tpu.memory_space<vmem>>, vector<8x128xf32>,
    return
  }
  func.func @transform_0(%arg0: i32) -> (i32, i32) {
    %c0_i32 = arith.constant 0 : i32
    %c0_i32_0 = arith.constant 0 : i32
    return %arg0, %c0_i32 : i32, i32
  }
  func.func @transform_1(%arg0: i32) -> (i32, i32) {
    %c0_i32 = arith.constant 0 : i32
    %c0_i32_0 = arith.constant 0 : i32
    %c0_i32_1 = arith.constant 0 : i32
    return %c0_i32, %c0_i32_0 : i32, i32
  }
  func.func @transform_2(%arg0: i32) -> (i32, i32) {
    %c0_i32 = arith.constant 0 : i32
    %c0_i32_0 = arith.constant 0 : i32
    %c0_i32_1 = arith.constant 0 : i32
    return %c0_i32, %c0_i32_0 : i32, i32
  }
  func.func @transform_3(%arg0: i32) -> (i32, i32) {
    %c0_i32 = arith.constant 0 : i32
    %c0_i32_0 = arith.constant 0 : i32
    %c0_i32_1 = arith.constant 0 : i32
    return %c0_i32, %c0_i32_0 : i32, i32
  }
  func.func @transform_4(%arg0: i32) -> (i32, i32) {
    %c0_i32 = arith.constant 0 : i32
    %c0_i32_0 = arith.constant 0 : i32
    %c0_i32_1 = arith.constant 0 : i32
    return %c0_i32, %c0_i32_0 : i32, i32
  }
  func.func @transform_5(%arg0: i32) -> (i32, i32) {
    %c0_i32 = arith.constant 0 : i32
    %c0_i32_0 = arith.constant 0 : i32
    %c0_i32_1 = arith.constant 0 : i32
    return %c0_i32, %c0_i32_0 : i32, i32
  }
  func.func @transform_6(%arg0: i32) -> (i32, i32) {
    %c0_i32 = arith.constant 0 : i32
    %c0_i32_0 = arith.constant 0 : i32
    %c0_i32_1 = arith.constant 0 : i32
    return %c0_i32, %c0_i32_0 : i32, i32
  }
  func.func @transform_7(%arg0: i32) -> (i32, i32) {
    %c0_i32 = arith.constant 0 : i32
    %c0_i32_0 = arith.constant 0 : i32
    return %arg0, %c0_i32 : i32, i32
  }
}

</mosaic_0001>

<llo_original>
// kernel: tpu_custom_call.1
$region0: #{tpu_custom_call.1}
  #allocation0 [shape = 'u32[]', space=smem, size = 0x4, offset = 0x4, fixed_abs, tag = 'smem constant byte address 0x4 - core index']
  #allocation1 [shape = 'u32[72,128]{1,0:T(1,128)}', space=vmem, size = 0x9000, scoped, tag = 'internal scratch']
  %s0 = inlined_call_operand.hbm [shape: f32[8,10], index: 0, kind: input, shape index: {}]
  %s1 = inlined_call_operand.hbm [shape: f32[10,128], index: 1, kind: input, shape index: {}]
  %s2 = inlined_call_operand.vmem [shape: f32[1,128], index: 2, kind: input, shape index: {}]
  %s3 = inlined_call_operand.hbm [shape: f32[128,128], index: 3, kind: input, shape index: {}]
  %s4 = inlined_call_operand.vmem [shape: f32[1,128], index: 4, kind: input, shape index: {}]
  %s5 = inlined_call_operand.hbm [shape: f32[128,128], index: 5, kind: input, shape index: {}]
  %s6 = inlined_call_operand.vmem [shape: f32[1,128], index: 6, kind: input, shape index: {}]
  %s7 = inlined_call_operand.hbm [shape: f32[8,128], index: 7, kind: output, shape index: {}]
  %s8 = sld [smem:[#allocation0]]
  $region54: #{tpu_custom_call.1} parent=0
    _
  %s10 = ssub.s32 1, %s8
  %s11 = scalar_select 0, %s10, %s8
  $region1: #{tpu_custom_call.1} parent=0
    #allocation2 [shape = 'u8[4096]{0}', space=vmem, size = 0x1000, scoped, tag = 'input window, operand 0, single buffered']
    #allocation3 [shape = 's32[1]{0}', space=sflag, size = 0x4, scoped, tag = 'scoped memory for tpu_custom_call.1']
    #allocation4 [shape = 's32[1]{0}', space=sflag, size = 0x4, scoped, tag = 'scoped memory for tpu_custom_call.1']
    #allocation5 [shape = 'u8[8192]{0}', space=vmem, size = 0x2000, scoped, tag = 'input window, operand 1, single buffered']
    #allocation6 [shape = 's32[1]{0}', space=sflag, size = 0x4, scoped, tag = 'scoped memory for tpu_custom_call.1']
    #allocation7 [shape = 'u8[65536]{0}', space=vmem, size = 0x10000, scoped, tag = 'input window, operand 3, single buffered']
    #allocation8 [shape = 'u8[65536]{0}', space=vmem, size = 0x10000, scoped, tag = 'input window, operand 5, single buffered']
    #allocation9 [shape = 's32[1]{0}', space=sflag, size = 0x4, scoped, tag = 'scoped memory for tpu_custom_call.1']
    #allocation10 [shape = 'u8[4096]{0}', space=vmem, size = 0x1000, scoped, tag = 'output window, operand 0, single buffered']
    %12 = vsyncpa [#allocation3], 0
    %13 = vsyncpa [#allocation6], 0
    %14 = vsyncpa [#allocation9], 0
    %15 = vsyncpa [#allocation4], 0
    // Predicated region
    $region2: #{tpu_custom_call.1} parent=1 // pred_check
      _
    $region3: #{tpu_custom_call.1} parent=1 // pred_check_branch
      %17 = sbr.rel (0) target = $region5
    $region4: #{tpu_custom_call.1} parent=1 // pred_region
      %19 = vsyncadd [#allocation3], 0
      %s21 = sshll.u32 %s0, 4
      %s22 = int_to_ptr.hbm [resolvable:$true] %s21
      %s23 = sshll.u32 [#allocation2], 4
      %s24 = int_to_ptr.vmem [resolvable:$true] %s23
      %26 = dma.hbm_to_vmem [thread:$0]  %s22, 128, %s24, [#allocation3]
    $region5: #{tpu_custom_call.1} parent=1 // pred_fallthru
      _
    // Predicated region
    $region6: #{tpu_custom_call.1} parent=1 // pred_check
      _
    $region7: #{tpu_custom_call.1} parent=1 // pred_check_branch
      %28 = sbr.rel (0) target = $region9
    $region8: #{tpu_custom_call.1} parent=1 // pred_region
      %30 = vsyncadd [#allocation6], 0
      %s31 = sshll.u32 %s1, 4
      %s32 = int_to_ptr.hbm [resolvable:$true] %s31
      %s33 = sshll.u32 [#allocation5], 4
      %s34 = int_to_ptr.vmem [resolvable:$true] %s33
      %39 = dma.hbm_to_vmem [thread:$0]  %s32, 256, %s34, [#allocation6], 128, 128, 8
    $region9: #{tpu_custom_call.1} parent=1 // pred_fallthru
      _
    // Predicated region
    $region10: #{tpu_custom_call.1} parent=1 // pred_check
      _
    $region11: #{tpu_custom_call.1} parent=1 // pred_check_branch
      %41 = sbr.rel (0) target = $region13
    $region12: #{tpu_custom_call.1} parent=1 // pred_region
      _
    $region13: #{tpu_custom_call.1} parent=1 // pred_fallthru
      _
    // Predicated region
    $region14: #{tpu_custom_call.1} parent=1 // pred_check
      _
    $region15: #{tpu_custom_call.1} parent=1 // pred_check_branch
      %43 = sbr.rel (0) target = $region17
    $region16: #{tpu_custom_call.1} parent=1 // pred_region
      %45 = vsyncadd [#allocation6], 0
      %s46 = sshll.u32 %s3, 4
      %s47 = int_to_ptr.hbm [resolvable:$true] %s46
      %s48 = sshll.u32 [#allocation7], 4
      %s49 = int_to_ptr.vmem [resolvable:$true] %s48
      %54 = dma.hbm_to_vmem [thread:$0]  %s47, 2048, %s49, [#allocation6], 128, 128, 8
    $region17: #{tpu_custom_call.1} parent=1 // pred_fallthru
      _
    // Predicated region
    $region18: #{tpu_custom_call.1} parent=1 // pred_check
      _
    $region19: #{tpu_custom_call.1} parent=1 // pred_check_branch
      %56 = sbr.rel (0) target = $region21
    $region20: #{tpu_custom_call.1} parent=1 // pred_region
      _
    $region21: #{tpu_custom_call.1} parent=1 // pred_fallthru
      _
    // Predicated region
    $region22: #{tpu_custom_call.1} parent=1 // pred_check
      _
    $region23: #{tpu_custom_call.1} parent=1 // pred_check_branch
      %58 = sbr.rel (0) target = $region25
    $region24: #{tpu_custom_call.1} parent=1 // pred_region
      %60 = vsyncadd [#allocation9], 0
      %s61 = sshll.u32 %s5, 4
      %s62 = int_to_ptr.hbm [resolvable:$true] %s61
      %s63 = sshll.u32 [#allocation8], 4
      %s64 = int_to_ptr.vmem [resolvable:$true] %s63
      %69 = dma.hbm_to_vmem [thread:$0]  %s62, 2048, %s64, [#allocation9], 128, 128, 8
    $region25: #{tpu_custom_call.1} parent=1 // pred_fallthru
      _
    // Predicated region
    $region26: #{tpu_custom_call.1} parent=1 // pred_check
      _
    $region27: #{tpu_custom_call.1} parent=1 // pred_check_branch
      %71 = sbr.rel (0) target = $region29
    $region28: #{tpu_custom_call.1} parent=1 // pred_region
      _
    $region29: #{tpu_custom_call.1} parent=1 // pred_fallthru
      _
    // Predicated region
    $region30: #{tpu_custom_call.1} parent=1 // pred_check
      _
    $region31: #{tpu_custom_call.1} parent=1 // pred_check_branch
      %73 = sbr.rel (0) target = $region33
    $region32: #{tpu_custom_call.1} parent=1 // pred_region
      %75 = dma.done [#allocation3], 128
    $region33: #{tpu_custom_call.1} parent=1 // pred_fallthru
      _
    // Predicated region
    $region34: #{tpu_custom_call.1} parent=1 // pred_check
      _
    $region35: #{tpu_custom_call.1} parent=1 // pred_check_branch
      %77 = sbr.rel (0) target = $region37
    $region36: #{tpu_custom_call.1} parent=1 // pred_region
      %79 = dma.done [#allocation6], 256
    $region37: #{tpu_custom_call.1} parent=1 // pred_fallthru
      _
    // Predicated region
    $region38: #{tpu_custom_call.1} parent=1 // pred_check
      _
    $region39: #{tpu_custom_call.1} parent=1 // pred_check_branch
      %81 = sbr.rel (0) target = $region41
    $region40: #{tpu_custom_call.1} parent=1 // pred_region
      %83 = dma.done [#allocation6], 2048
    $region41: #{tpu_custom_call.1} parent=1 // pred_fallthru
      _
    // Predicated region
    $region42: #{tpu_custom_call.1} parent=1 // pred_check
      _
    $region43: #{tpu_custom_call.1} parent=1 // pred_check_branch
      %85 = sbr.rel (0) target = $region45
    $region44: #{tpu_custom_call.1} parent=1 // pred_region
      %87 = dma.done [#allocation9], 2048
    $region45: #{tpu_custom_call.1} parent=1 // pred_fallthru
      _
    %v88 = vld [vmem:[#allocation2] sm:$0xff]
    %v89 = vld [vmem:[#allocation5] sm:$0xff]
    %v90 = vld [vmem:[#allocation5 + $0x8] sm:$0x3]
    %v91 = vld [vmem:[%s2] sm:$0x1]
    %v93 = vperm.slane %v91, 0
    %vm95 = vcmask 80896
    %v97 = vsel %vm95, %v88, 0
    %vm99 = vcmask 1041408
    %v101 = vsel %vm99, %v90, 0
    %103 = vmatpush.msra.mxu0 0.0
    %104 = vmatpush.msra.mxu0 0.0
    %105 = vmatpush.msra.mxu0 0.0
    %106 = vmatpush.msra.mxu0 0.0
    %107 = vmatpush.msra.mxu0 0.0
    %108 = vmatpush.msra.mxu0 0.0
    %109 = vmatpush.msra.mxu0 0.0
    %110 = vmatpush.msra.mxu0 0.0
    %111 = vmatpush.msra.mxu0 0.0
    %112 = vmatpush.msra.mxu0 0.0
    %113 = vmatpush.msra.mxu0 0.0
    %114 = vmatpush.msra.mxu0 0.0
    %115 = vmatpush.msra.mxu0 0.0
    %116 = vmatpush.msra.mxu0 0.0
    %117 = vmatpush.msra.mxu0 %v101
    %118 = vmatpush.msra.mxu0 %v89
    %119 = vmatmul.f32.gmra.mxu0 %v97
    %v120 = vpop.f32.mrf.mxu0
    %v121 = vadd.f32 %v93, %v120
    %122 = vdwg.mxu0
    %v123 = vmax.f32 %v121, 0.0
    %v124 = vld [vmem:[#allocation7] sm:$0xff]
    %v125 = vld [vmem:[#allocation7 + $0x8] sm:$0xff]
    %v126 = vld [vmem:[#allocation7 + $0x10] sm:$0xff]
    %v127 = vld [vmem:[#allocation7 + $0x18] sm:$0xff]
    %v128 = vld [vmem:[#allocation7 + $0x20] sm:$0xff]
    %v129 = vld [vmem:[#allocation7 + $0x28] sm:$0xff]
    %v130 = vld [vmem:[#allocation7 + $0x30] sm:$0xff]
    %v131 = vld [vmem:[#allocation7 + $0x38] sm:$0xff]
    %v132 = vld [vmem:[#allocation7 + $0x40] sm:$0xff]
    %v133 = vld [vmem:[#allocation7 + $0x48] sm:$0xff]
    %v134 = vld [vmem:[#allocation7 + $0x50] sm:$0xff]
    %v135 = vld [vmem:[#allocation7 + $0x58] sm:$0xff]
    %v136 = vld [vmem:[#allocation7 + $0x60] sm:$0xff]
    %v137 = vld [vmem:[#allocation7 + $0x68] sm:$0xff]
    %v138 = vld [vmem:[#allocation7 + $0x70] sm:$0xff]
    %v139 = vld [vmem:[#allocation7 + $0x78] sm:$0xff]
    %v140 = vld [vmem:[%s4] sm:$0x1]
    %v142 = vperm.slane %v140, 0
    %144 = vmatpush.msra.mxu0 %v139
    %145 = vmatpush.msra.mxu0 %v138
    %146 = vmatpush.msra.mxu0 %v137
    %147 = vmatpush.msra.mxu0 %v136
    %148 = vmatpush.msra.mxu0 %v135
    %149 = vmatpush.msra.mxu0 %v134
    %150 = vmatpush.msra.mxu0 %v133
    %151 = vmatpush.msra.mxu0 %v132
    %152 = vmatpush.msra.mxu0 %v131
    %153 = vmatpush.msra.mxu0 %v130
    %154 = vmatpush.msra.mxu0 %v129
    %155 = vmatpush.msra.mxu0 %v128
    %156 = vmatpush.msra.mxu0 %v127
    %157 = vmatpush.msra.mxu0 %v126
    %158 = vmatpush.msra.mxu0 %v125
    %159 = vmatpush.msra.mxu0 %v124
    %160 = vmatmul.f32.gmra.mxu0 %v123
    %v161 = vpop.f32.mrf.mxu0
    %v162 = vadd.f32 %v142, %v161
    %163 = vdwg.mxu0
    %v164 = vmax.f32 %v162, 0.0
    %v165 = vld [vmem:[#allocation8] sm:$0xff]
    %v166 = vld [vmem:[#allocation8 + $0x8] sm:$0xff]
    %v167 = vld [vmem:[#allocation8 + $0x10] sm:$0xff]
    %v168 = vld [vmem:[#allocation8 + $0x18] sm:$0xff]
    %v169 = vld [vmem:[#allocation8 + $0x20] sm:$0xff]
    %v170 = vld [vmem:[#allocation8 + $0x28] sm:$0xff]
    %v171 = vld [vmem:[#allocation8 + $0x30] sm:$0xff]
    %v172 = vld [vmem:[#allocation8 + $0x38] sm:$0xff]
    %v173 = vld [vmem:[#allocation8 + $0x40] sm:$0xff]
    %v174 = vld [vmem:[#allocation8 + $0x48] sm:$0xff]
    %v175 = vld [vmem:[#allocation8 + $0x50] sm:$0xff]
    %v176 = vld [vmem:[#allocation8 + $0x58] sm:$0xff]
    %v177 = vld [vmem:[#allocation8 + $0x60] sm:$0xff]
    %v178 = vld [vmem:[#allocation8 + $0x68] sm:$0xff]
    %v179 = vld [vmem:[#allocation8 + $0x70] sm:$0xff]
    %v180 = vld [vmem:[#allocation8 + $0x78] sm:$0xff]
    %v181 = vld [vmem:[%s6] sm:$0x1]
    %v183 = vperm.slane %v181, 0
    %185 = vmatpush.msra.mxu0 %v180
    %186 = vmatpush.msra.mxu0 %v179
    %187 = vmatpush.msra.mxu0 %v178
    %188 = vmatpush.msra.mxu0 %v177
    %189 = vmatpush.msra.mxu0 %v176
    %190 = vmatpush.msra.mxu0 %v175
    %191 = vmatpush.msra.mxu0 %v174
    %192 = vmatpush.msra.mxu0 %v173
    %193 = vmatpush.msra.mxu0 %v172
    %194 = vmatpush.msra.mxu0 %v171
    %195 = vmatpush.msra.mxu0 %v170
    %196 = vmatpush.msra.mxu0 %v169
    %197 = vmatpush.msra.mxu0 %v168
    %198 = vmatpush.msra.mxu0 %v167
    %199 = vmatpush.msra.mxu0 %v166
    %200 = vmatpush.msra.mxu0 %v165
    %201 = vmatmul.f32.gmra.mxu0 %v164
    %v202 = vpop.f32.mrf.mxu0
    %v203 = vadd.f32 %v183, %v202
    %204 = vdwg.mxu0
    %205 = vst [vmem:[#allocation10] sm:$0xff] %v203
    // Predicated region
    $region46: #{tpu_custom_call.1} parent=1 // pred_check
      _
    $region47: #{tpu_custom_call.1} parent=1 // pred_check_branch
      %207 = sbr.rel (0) target = $region49
    $region48: #{tpu_custom_call.1} parent=1 // pred_region
      %209 = vsyncadd [#allocation4], 0
      %s211 = sshll.u32 [#allocation10], 4
      %s212 = int_to_ptr.vmem [resolvable:$true] %s211
      %s213 = sshll.u32 %s7, 4
      %s214 = int_to_ptr.hbm [resolvable:$true] %s213
      %216 = dma.vmem_to_hbm [thread:$0]  %s212, 128, %s214, [#allocation4]
    $region49: #{tpu_custom_call.1} parent=1 // pred_fallthru
      _
    // Predicated region
    $region50: #{tpu_custom_call.1} parent=1 // pred_check
      _
    $region51: #{tpu_custom_call.1} parent=1 // pred_check_branch
      %218 = sbr.rel (0) target = $region53
    $region52: #{tpu_custom_call.1} parent=1 // pred_region
      %220 = dma.done [#allocation4], 128
    $region53: #{tpu_custom_call.1} parent=1 // pred_fallthru
      _
    %221 = vsyncpa [#allocation3], 1
    %222 = vsyncpa [#allocation6], 1
    %223 = vsyncpa [#allocation9], 1
    %224 = vsyncpa [#allocation4], 1

</llo_original>
